<compile_context>
chip_gen: v7x
topology: tpu7x:2x2x1
jax: 0.10.0
libtpu: 0.0.40
codegen_flags: <defaults>
</compile_context>

<pallas_src>
import math

import jax
import jax.numpy as jnp
from jax.experimental import pallas as pl
from jax.experimental.pallas import tpu as pltpu


def _round_up(x, m):
    return (x + m - 1) // m * m


def _cdiv(a, b):
    return (a + b - 1) // b


# ---------------------------------------------------------------------------
# Kernel
# ---------------------------------------------------------------------------
def _encoder_kernel(x_ref, w1_ref, b1_ref, w2_ref, b2_ref, o_ref, h_ref):
    """grid = (batch tiles i [parallel], fc2 column tiles j [arbitrary]).

    fc1 (including the x -> MXU-dtype cast) runs once per batch tile at j == 0
    and its ReLU'd result is kept in a VMEM scratch; every j step then does one
    (tb, H_pad) @ (H_pad, tn) MXU pass producing a column slice of fc2.
    """
    @pl.when(pl.program_id(1) == 0)
    def _():
        # Cast x on the VPU right before the MXU (no wrapper-side HBM pass);
        # f32 accumulation, bias + ReLU in f32.
        h = jnp.dot(x_ref[...].astype(w1_ref.dtype), w1_ref[...],
                    preferred_element_type=jnp.float32)
        h_ref[...] = jnp.maximum(h + b1_ref[...], 0.0).astype(h_ref.dtype)

    y = jnp.dot(h_ref[...], w2_ref[...], preferred_element_type=jnp.float32)
    o_ref[...] = (y + b2_ref[...]).astype(o_ref.dtype)


# ---------------------------------------------------------------------------
# One-time weight preparation (hoisted off the per-call path)
# ---------------------------------------------------------------------------
def prepare_params(w1, b1, w2, b2, *, hidden_align=256,
                   matmul_dtype=jnp.bfloat16):
    """Pad the hidden dim for MXU/lane alignment and cast weights to the MXU
    dtype. Call ONCE and reuse across tabular_encoder() calls so per-call HBM
    traffic is only x + output. Use hidden_align=128 on v5e (4x128x128 MXU)."""
    d_in, h = w1.shape
    h_pad = _round_up(h, hidden_align)
    ph = h_pad - h
    b1 = jnp.asarray(b1).reshape(1, h)
    b2 = jnp.asarray(b2).reshape(1, h)
    return {
        "w1": jnp.pad(w1, ((0, 0), (0, ph))).astype(matmul_dtype),
        "b1": jnp.pad(b1, ((0, 0), (0, ph))).astype(jnp.float32),
        "w2": jnp.pad(w2, ((0, ph), (0, ph))).astype(matmul_dtype),
        "b2": jnp.pad(b2, ((0, 0), (0, ph))).astype(jnp.float32),
        "input_dim": d_in, "hidden_dim": h, "hidden_pad": h_pad,
        "matmul_dtype": jnp.dtype(matmul_dtype),
    }


def _vmem_limit_bytes():
    cap = 64 * 1024 * 1024  # conservative fallback (v7x per-TensorCore VMEM)
    try:
        cap = int(getattr(pltpu.get_tpu_info(), "vmem_capacity_bytes", cap))
    except Exception:
        pass
    # ~48 MiB on v7x (64 MiB physical), ~96 MiB on v5e/v6e (128 MiB physical).
    return min(int(cap * 0.75), 100 * 1024 * 1024)


def _choose_block_n(h_pad, tb, d_in, x_bytes, mm_bytes, out_bytes, budget):
    """Largest 256-aligned divisor of h_pad whose working set fits `budget`."""
    candidates = [t for t in range(h_pad, 255, -256) if h_pad % t == 0] or [h_pad]
    for tn in candidates:
        n_j = h_pad // tn
        w2_bufs = 1 if n_j == 1 else 2
        usage = (
            2 * tb * d_in * x_bytes                        # x tile (dbl-buffered)
            + d_in * h_pad * mm_bytes                      # w1 (resident)
            + h_pad * 4                                    # b1 (f32, resident)
            + w2_bufs * (h_pad * tn * mm_bytes + tn * 4)   # w2 + b2 tiles
            + 2 * tb * tn * out_bytes                      # out tile (dbl-buffered)
            + tb * h_pad * mm_bytes                        # fc1 activation scratch
        )
        if usage <= budget:
            return tn
    return candidates[-1]


# ---------------------------------------------------------------------------
# Wrapper
# ---------------------------------------------------------------------------
def tabular_encoder(x, params, *, block_batch=512, block_n=None,
                    out_dtype=None, interpret=False):
    """Fused fc1 -> ReLU -> fc2. x: (batch, input_dim), native dtype (cast to
    the MXU dtype in-kernel). Returns (batch, hidden_dim) in `out_dtype`
    (default x.dtype; pass bf16 if downstream accepts it to halve writeback).

    Keep block_batch >= 256-512 in production (tile sweep: 512 ~ 85% of HBM
    roofline vs ~29% at 128); tiny values are for tests only.
    """
    w1, b1, w2, b2 = params["w1"], params["b1"], params["w2"], params["b2"]
    d_in, h, h_pad = params["input_dim"], params["hidden_dim"], params["hidden_pad"]
    mm_dtype = params["matmul_dtype"]
    assert x.ndim == 2 and x.shape[1] == d_in

    b = x.shape[0]
    out_dtype = jnp.dtype(out_dtype) if out_dtype is not None else x.dtype

    # Batch tile: MXU-dtype sublane packing (16 for bf16, 32 for 8-bit) and a
    # cap that guarantees >= 2 batch blocks so both v7x TensorCores get work.
    sub = max(16, 32 // max(1, jnp.dtype(mm_dtype).itemsize))
    cap = _round_up(_cdiv(b, 2), sub)
    tb = max(sub, min(_round_up(block_batch, sub), cap, _round_up(b, sub)))
    b_pad = _round_up(b, tb)

    vmem_limit = _vmem_limit_bytes()
    x_bytes = jnp.dtype(x.dtype).itemsize
    mm_bytes = jnp.dtype(mm_dtype).itemsize
    out_bytes = jnp.dtype(out_dtype).itemsize
    if block_n is None:
        tn = _choose_block_n(h_pad, tb, d_in, x_bytes, mm_bytes, out_bytes,
                             budget=int(vmem_limit * 0.8))
    else:
        tn = block_n
        assert h_pad % tn == 0 and tn % 128 == 0
    n_j = h_pad // tn
    w2_resident = n_j == 1

    # Pad only the batch dim, only when needed, in x's native dtype.
    x_in = x if b_pad == b else jnp.pad(x, ((0, b_pad - b), (0, 0)))

    resident = dict(pipeline_mode=pl.Buffered(1))   # block index never changes
    w2_mode = resident if w2_resident else {}
    grid = (b_pad // tb, n_j)

    cost = pl.CostEstimate(
        flops=2 * b_pad * d_in * h_pad + 2 * b_pad * h_pad * h_pad,
        transcendentals=0,
        bytes_accessed=(b_pad * d_in * x_bytes
                        + d_in * h_pad * mm_bytes
                        + (1 if w2_resident else grid[0]) * h_pad * h_pad * mm_bytes
                        + 2 * h_pad * 4
                        + b_pad * h_pad * out_bytes),
    )

    # TODO(synk): add K-tiling of fc1 for very large input_dim (w1 is currently
    # VMEM-resident for the whole call).
    out = pl.pallas_call(
        _encoder_kernel,
        out_shape=jax.ShapeDtypeStruct((b_pad, h_pad), out_dtype),
        grid_spec=pl.GridSpec(
            grid=grid,
            in_specs=[
                pl.BlockSpec((tb, d_in), lambda i, j: (i, 0)),
                pl.BlockSpec((d_in, h_pad), lambda i, j: (0, 0), **resident),
                pl.BlockSpec((1, h_pad), lambda i, j: (0, 0), **resident),
                pl.BlockSpec((h_pad, tn), lambda i, j: (0, j), **w2_mode),
                pl.BlockSpec((1, tn), lambda i, j: (0, j), **w2_mode),
            ],
            out_specs=pl.BlockSpec((tb, tn), lambda i, j: (i, j)),
            scratch_shapes=[pltpu.VMEM((tb, h_pad), mm_dtype)],
        ),
        compiler_params=pltpu.CompilerParams(
            dimension_semantics=("parallel", "arbitrary"),
            vmem_limit_bytes=vmem_limit,
        ),
        cost_estimate=cost,
        interpret=interpret,
    )(x_in, w1, b1, w2, b2)

    # Slice back only when padding actually happened (no-op for aligned shapes).
    if b_pad != b or h_pad != h:
        out = out[:b, :h]
    return out


if __name__ == "__main__":
    batch = 20           # deliberately NOT a multiple of the batch tile
    input_dim = 16
    hidden_dim = 32      # padded to 256 inside prepare_params

    key = jax.random.PRNGKey(0)
    kx, kp = jax.random.split(key)
    x = jax.random.normal(kx, (batch, input_dim), jnp.float32)

    # PyTorch nn.Linear-style init (uniform +/- 1/sqrt(fan_in)), (in, out) layout.
    k1, k2, k3, k4 = jax.random.split(kp, 4)
    bound1 = 1.0 / math.sqrt(input_dim)
    bound2 = 1.0 / math.sqrt(hidden_dim)
    w1 = jax.random.uniform(k1, (input_dim, hidden_dim), jnp.float32, -bound1, bound1)
    b1 = jax.random.uniform(k2, (hidden_dim,), jnp.float32, -bound1, bound1)
    w2 = jax.random.uniform(k3, (hidden_dim, hidden_dim), jnp.float32, -bound2, bound2)
    b2 = jax.random.uniform(k4, (hidden_dim,), jnp.float32, -bound2, bound2)

    # One-time weight prep (pad + bf16 cast), reused across calls.
    params = prepare_params(w1, b1, w2, b2)

    # Small block_batch so the example exercises a multi-step "parallel" batch
    # grid (tb rounds to 16 -> 2 batch tiles) plus the pad / slice-back path.
    out = tabular_encoder(x, params, block_batch=8)
    out = jax.block_until_ready(out)

    # Pure-JAX f32 reference; bf16 MXU inputs -> ~1e-2 level tolerance.
    ref = jnp.maximum(x @ w1 + b1[None, :], 0.0) @ w2 + b2[None, :]
    assert out.shape == (batch, hidden_dim), out.shape
    assert jnp.allclose(out, ref, atol=3e-2, rtol=3e-2), float(
        jnp.max(jnp.abs(out - ref)))

    print("KERNEL_OK")
</pallas_src>

<mosaic_0001>
module attributes {stable_mosaic.version = 11 : i64} {
  func.func @_encoder_kernel(%arg0: i32, %arg1: i32, %arg2: memref<16x16xf32, #tpu.memory_space<vmem>>, %arg3: memref<16x256xbf16, #tpu.memory_space<vmem>>, %arg4: memref<1x256xf32, #tpu.memory_space<vmem>>, %arg5: memref<256x256xbf16, #tpu.memory_space<vmem>>, %arg6: memref<1x256xf32, #tpu.memory_space<vmem>>, %arg7: memref<16x256xf32, #tpu.memory_space<vmem>>, %arg8: memref<16x256xbf16, #tpu.memory_space<vmem>>) attributes {dimension_semantics = [#tpu.dimension_semantics<parallel>, #tpu.dimension_semantics<arbitrary>], iteration_bounds = array<i64: 2, 1>, scalar_prefetch = 0 : i64, scratch_operands = 1 : i64, tpu.core_type = #tpu.core_type<tc>, window_params = [{transform_indices = @transform_0, window_bounds = array<i64: 16, 16>}, {pipeline_mode = #tpu.pipeline_mode<synchronous>, transform_indices = @transform_1, window_bounds = array<i64: 16, 256>}, {pipeline_mode = #tpu.pipeline_mode<synchronous>, transform_indices = @transform_2, window_bounds = array<i64: 1, 256>}, {pipeline_mode = #tpu.pipeline_mode<synchronous>, transform_indices = @transform_3, window_bounds = array<i64: 256, 256>}, {pipeline_mode = #tpu.pipeline_mode<synchronous>, transform_indices = @transform_4, window_bounds = array<i64: 1, 256>}, {transform_indices = @transform_5, window_bounds = array<i64: 16, 256>}]} {
    %c0_i32 = arith.constant 0 : i32
    %0 = arith.cmpi eq, %arg1, %c0_i32 : i32
    %1 = arith.extui %0 : i1 to i32
    %c0_i32_0 = arith.constant 0 : i32
    %2 = arith.cmpi ne, %1, %c0_i32_0 : i32
    scf.if %2 {
      %c0_8 = arith.constant 0 : index
      %c0_9 = arith.constant 0 : index
      %10 = vector.load %arg2[%c0_8, %c0_9] : memref<16x16xf32, #tpu.memory_space<vmem>>, vector<16x16xf32>
      %11 = arith.truncf %10 : vector<16x16xf32> to vector<16x16xbf16>
      %c0_10 = arith.constant 0 : index
      %c0_11 = arith.constant 0 : index
      %12 = vector.load %arg3[%c0_10, %c0_11] : memref<16x256xbf16, #tpu.memory_space<vmem>>, vector<16x256xbf16>
      %cst_12 = arith.constant dense<0.000000e+00> : vector<16x256xf32>
      %13 = tpu.matmul %11, %12, %cst_12 {dimension_numbers = #tpu.dot_dimension_numbers<[1], [0], [0], [1], [0, 0, 1, 1], [], []>} : vector<16x16xbf16>, vector<16x256xbf16>, vector<16x256xf32> -> vector<16x256xf32>
      %c0_13 = arith.constant 0 : index
      %c0_14 = arith.constant 0 : index
      %14 = vector.load %arg4[%c0_13, %c0_14] : memref<1x256xf32, #tpu.memory_space<vmem>>, vector<1x256xf32>
      %15 = vector.broadcast %14 : vector<1x256xf32> to vector<16x256xf32>
      %16 = arith.addf %13, %15 : vector<16x256xf32>
      %cst_15 = arith.constant 0.000000e+00 : f32
      %17 = vector.broadcast %cst_15 : f32 to vector<16x256xf32>
      %18 = arith.maximumf %16, %17 : vector<16x256xf32>
      %19 = arith.truncf %18 : vector<16x256xf32> to vector<16x256xbf16>
      %c0_16 = arith.constant 0 : index
      %c0_17 = arith.constant 0 : index
      %20 = vector.load %arg8[%c0_16, %c0_17] : memref<16x256xbf16, #tpu.memory_space<vmem>>, vector<16x256xbf16>
      tpu.vector_store %arg8[%c0_16, %c0_17], %19 {strides = array<i32>} : memref<16x256xbf16, #tpu.memory_space<vmem>>, vector<16x256xbf16>,
    } else {
    }
    %c0 = arith.constant 0 : index
    %c0_1 = arith.constant 0 : index
    %3 = vector.load %arg8[%c0, %c0_1] : memref<16x256xbf16, #tpu.memory_space<vmem>>, vector<16x256xbf16>
    %c0_2 = arith.constant 0 : index
    %c0_3 = arith.constant 0 : index
    %4 = vector.load %arg5[%c0_2, %c0_3] : memref<256x256xbf16, #tpu.memory_space<vmem>>, vector<256x256xbf16>
    %cst = arith.constant dense<0.000000e+00> : vector<16x256xf32>
    %5 = tpu.matmul %3, %4, %cst {dimension_numbers = #tpu.dot_dimension_numbers<[1], [0], [0], [1], [0, 0, 1, 1], [], []>} : vector<16x256xbf16>, vector<256x256xbf16>, vector<16x256xf32> -> vector<16x256xf32>
    %c0_4 = arith.constant 0 : index
    %c0_5 = arith.constant 0 : index
    %6 = vector.load %arg6[%c0_4, %c0_5] : memref<1x256xf32, #tpu.memory_space<vmem>>, vector<1x256xf32>
    %7 = vector.broadcast %6 : vector<1x256xf32> to vector<16x256xf32>
    %8 = arith.addf %5, %7 : vector<16x256xf32>
    %c0_6 = arith.constant 0 : index
    %c0_7 = arith.constant 0 : index
    %9 = vector.load %arg7[%c0_6, %c0_7] : memref<16x256xf32, #tpu.memory_space<vmem>>, vector<16x256xf32>
    tpu.vector_store %arg7[%c0_6, %c0_7], %8 {strides = array<i32>} : memref<16x256xf32, #tpu.memory_space<vmem>>, vector<16x256xf32>,
    return
  }
  func.func @transform_0(%arg0: i32, %arg1: i32) -> (i32, i32) {
    %c0_i32 = arith.constant 0 : i32
    %c0_i32_0 = arith.constant 0 : i32
    return %arg0, %c0_i32 : i32, i32
  }
  func.func @transform_1(%arg0: i32, %arg1: i32) -> (i32, i32) {
    %c0_i32 = arith.constant 0 : i32
    %c0_i32_0 = arith.constant 0 : i32
    %c0_i32_1 = arith.constant 0 : i32
    return %c0_i32, %c0_i32_0 : i32, i32
  }
  func.func @transform_2(%arg0: i32, %arg1: i32) -> (i32, i32) {
    %c0_i32 = arith.constant 0 : i32
    %c0_i32_0 = arith.constant 0 : i32
    %c0_i32_1 = arith.constant 0 : i32
    return %c0_i32, %c0_i32_0 : i32, i32
  }
  func.func @transform_3(%arg0: i32, %arg1: i32) -> (i32, i32) {
    %c0_i32 = arith.constant 0 : i32
    %c0_i32_0 = arith.constant 0 : i32
    return %c0_i32, %arg1 : i32, i32
  }
  func.func @transform_4(%arg0: i32, %arg1: i32) -> (i32, i32) {
    %c0_i32 = arith.constant 0 : i32
    %c0_i32_0 = arith.constant 0 : i32
    return %c0_i32, %arg1 : i32, i32
  }
  func.func @transform_5(%arg0: i32, %arg1: i32) -> (i32, i32) {
    %c0_i32 = arith.constant 0 : i32
    return %arg0, %arg1 : i32, i32
  }
}

</mosaic_0001>

<llo_original>
// kernel: tpu_custom_call.1
$region0: #{tpu_custom_call.1}
  #allocation0 [shape = 'u32[]', space=smem, size = 0x4, offset = 0x4, fixed_abs, tag = 'smem constant byte address 0x4 - core index']
  #allocation1 [shape = 'u32[144,128]{1,0:T(1,128)}', space=vmem, size = 0x12000, scoped, tag = 'internal scratch']
  #allocation2 [shape = 'bf16[16,256]{1,0:T(16,128)(2,1)}', space=vmem, size = 0x2000, scoped, tag = 'scratch operand']
  %s0 = inlined_call_operand.vmem [shape: f32[32,16], index: 0, kind: input, shape index: {}]
  %s1 = inlined_call_operand.vmem [shape: bf16[16,256], index: 1, kind: input, shape index: {}]
  %s2 = inlined_call_operand.vmem [shape: f32[1,256], index: 2, kind: input, shape index: {}]
  %s3 = inlined_call_operand.hbm [shape: bf16[256,256], index: 3, kind: input, shape index: {}]
  %s4 = inlined_call_operand.vmem [shape: f32[1,256], index: 4, kind: input, shape index: {}]
  %s5 = inlined_call_operand.hbm [shape: f32[32,256], index: 5, kind: output, shape index: {}]
  %s6 = sld [smem:[#allocation0]]
  $region61: #{tpu_custom_call.1} parent=0
    _
  %s8 = ssub.s32 1, %s6
  %s9 = scalar_select 0, %s8, %s6
  $region1: #{tpu_custom_call.1} parent=0
    #allocation3 [shape = 'u8[131072]{0}', space=vmem, size = 0x20000, scoped, tag = 'input window, operand 3, single buffered']
    #allocation4 [shape = 's32[2]{0}', space=sflag, size = 0x8, scoped, tag = 'scoped memory for tpu_custom_call.1']
    #allocation5 [shape = 's32[2]{0}', space=sflag, size = 0x8, scoped, tag = 'scoped memory for tpu_custom_call.1']
    #allocation6 [shape = 'u8[32768]{0}', space=vmem, size = 0x8000, scoped, tag = 'output window, operand 0']
    %10 = vsyncpa [#allocation4], 0
    %11 = vsyncpa [#allocation5], 0
    %s12 = scalar_lea.sflag [#allocation5], 1
    %13 = vsyncpa %s12, 0
    loop: start=0, step=1, limit=4
    $region2: #{tpu_custom_call.1} parent=1 // loop_pre_header
      _
    $region3: #{tpu_custom_call.1} parent=1 // loop_header
      %s15 = sphi 0, %s19
      %p16 = scmp.ge.s32.totalorder %s15, 4
      %s22 = sphi 0, %s34
      %s23 = sphi 0, %s30
      %s24 = sphi 0, %s22
      %s25 = sphi 0, %s23
      %s26 = sphi 0, %s24
      %s27 = sphi 0, %s25
      %s37 = sphi 0, %s39
      %s40 = sphi 0, %s37
      %s41 = sphi 0, %s40
      %s57 = sphi 0, %s41
      %s61 = sphi 0, %s61
      %s63 = sphi 0, %s61
      %s64 = sphi 0, %s63
      %s78 = sphi 0, %s64
      %s82 = sphi 0, %s82
      %s84 = sphi 0, %s82
      %s85 = sphi 0, %s84
      %s99 = sphi 0, %s85
      %s105 = sphi 0, %s107
      %s108 = sphi 0, %s105
      %s109 = sphi 0, %s108
      %s125 = sphi 0, %s109
      %s131 = sphi 0, %s133
      %s134 = sphi 0, %s131
      %s135 = sphi 0, %s134
      %s151 = sphi 0, %s135
      %s159 = sphi 0, %s161
      %s162 = sphi 0, %s159
      %s163 = sphi 0, %s162
      %s179 = sphi 0, %s163
    $region4: #{tpu_custom_call.1} parent=1 // loop_header_branch
      %18 = sbr.rel (%p16) target = $region8
    $region5: #{tpu_custom_call.1} parent=1 // loop_body
      %s20 = ssub.s32 %s15, 1
      %s21 = ssub.s32 %s15, 2
      %s28 = sadd.s32 1, %s23
      %p29 = scmp.ge.s32.totalorder %s28, 1
      %s30 = scalar_select %p29, 0, %s28
      %s31 = sadd.s32 1, %s22
      %s32 = scalar_select %p29, %s31, %s22
      %p33 = scmp.ge.s32.totalorder %s32, 2
      %s34 = scalar_select %p33, 0, %s32
      %s35 = ssub.s32 %s22, %s34
      %p36 = scmp.eq.s32.totalorder %s35, 0
      %s38 = sadd.s32 %s37, 1
      %s39 = scalar_select %p36, %s37, %s38
      %p42 = pneg %p36
      %p43 = scmp.eq.s32.totalorder %s15, 1
      %p44 = por %p42, %p43
      %p45 = scmp.ne.s32.totalorder %s37, %s40
      %p46 = scmp.eq.s32.totalorder %s15, 0
      %p47 = por %p45, %p46
      %p48 = scmp.ne.s32.totalorder %s37, %s40
      %p49 = scmp.eq.s32.totalorder %s20, 1
      %p50 = por %p48, %p49
      %p51 = scmp.ne.s32.totalorder %s40, %s41
      %p52 = scmp.eq.s32.totalorder %s20, 0
      %p53 = por %p51, %p52
      %p54 = scmp.ne.s32.totalorder %s40, %s41
      %p55 = scmp.eq.s32.totalorder %s21, 1
      %p56 = por %p54, %p55
      %p58 = scmp.ne.s32.totalorder %s41, %s57
      %p59 = scmp.eq.s32.totalorder %s21, 0
      %p60 = por %p58, %p59
      %s62 = sadd.s32 %s61, 1
      %p65 = scmp.eq.s32.totalorder %s15, 1
      %p66 = scmp.ne.s32.totalorder %s61, %s63
      %p67 = scmp.eq.s32.totalorder %s15, 0
      %p68 = por %p66, %p67
      %p69 = scmp.ne.s32.totalorder %s61, %s63
      %p70 = scmp.eq.s32.totalorder %s20, 1
      %p71 = por %p69, %p70
      %p72 = scmp.ne.s32.totalorder %s63, %s64
      %p73 = scmp.eq.s32.totalorder %s20, 0
      %p74 = por %p72, %p73
      %p75 = scmp.ne.s32.totalorder %s63, %s64
      %p76 = scmp.eq.s32.totalorder %s21, 1
      %p77 = por %p75, %p76
      %p79 = scmp.ne.s32.totalorder %s64, %s78
      %p80 = scmp.eq.s32.totalorder %s21, 0
      %p81 = por %p79, %p80
      %s83 = sadd.s32 %s82, 1
      %p86 = scmp.eq.s32.totalorder %s15, 1
      %p87 = scmp.ne.s32.totalorder %s82, %s84
      %p88 = scmp.eq.s32.totalorder %s15, 0
      %p89 = por %p87, %p88
      %p90 = scmp.ne.s32.totalorder %s82, %s84
      %p91 = scmp.eq.s32.totalorder %s20, 1
      %p92 = por %p90, %p91
      %p93 = scmp.ne.s32.totalorder %s84, %s85
      %p94 = scmp.eq.s32.totalorder %s20, 0
      %p95 = por %p93, %p94
      %p96 = scmp.ne.s32.totalorder %s84, %s85
      %p97 = scmp.eq.s32.totalorder %s21, 1
      %p98 = por %p96, %p97
      %p100 = scmp.ne.s32.totalorder %s85, %s99
      %p101 = scmp.eq.s32.totalorder %s21, 0
      %p102 = por %p100, %p101
      %s103 = ssub.s32 %s23, %s30
      %p104 = scmp.eq.s32.totalorder %s103, 0
      %s106 = sadd.s32 %s105, 1
      %s107 = scalar_select %p104, %s105, %s106
      %p110 = pneg %p104
      %p111 = scmp.eq.s32.totalorder %s15, 1
      %p112 = por %p110, %p111
      %p113 = scmp.ne.s32.totalorder %s105, %s108
      %p114 = scmp.eq.s32.totalorder %s15, 0
      %p115 = por %p113, %p114
      %p116 = scmp.ne.s32.totalorder %s105, %s108
      %p117 = scmp.eq.s32.totalorder %s20, 1
      %p118 = por %p116, %p117
      %p119 = scmp.ne.s32.totalorder %s108, %s109
      %p120 = scmp.eq.s32.totalorder %s20, 0
      %p121 = por %p119, %p120
      %p122 = scmp.ne.s32.totalorder %s108, %s109
      %p123 = scmp.eq.s32.totalorder %s21, 1
      %p124 = por %p122, %p123
      %p126 = scmp.ne.s32.totalorder %s109, %s125
      %p127 = scmp.eq.s32.totalorder %s21, 0
      %p128 = por %p126, %p127
      %s129 = ssub.s32 %s23, %s30
      %p130 = scmp.eq.s32.totalorder %s129, 0
      %s132 = sadd.s32 %s131, 1
      %s133 = scalar_select %p130, %s131, %s132
      %p136 = pneg %p130
      %p137 = scmp.eq.s32.totalorder %s15, 1
      %p138 = por %p136, %p137
      %p139 = scmp.ne.s32.totalorder %s131, %s134
      %p140 = scmp.eq.s32.totalorder %s15, 0
      %p141 = por %p139, %p140
      %p142 = scmp.ne.s32.totalorder %s131, %s134
      %p143 = scmp.eq.s32.totalorder %s20, 1
      %p144 = por %p142, %p143
      %p145 = scmp.ne.s32.totalorder %s134, %s135
      %p146 = scmp.eq.s32.totalorder %s20, 0
      %p147 = por %p145, %p146
      %p148 = scmp.ne.s32.totalorder %s134, %s135
      %p149 = scmp.eq.s32.totalorder %s21, 1
      %p150 = por %p148, %p149
      %p152 = scmp.ne.s32.totalorder %s135, %s151
      %p153 = scmp.eq.s32.totalorder %s21, 0
      %p154 = por %p152, %p153
      %s155 = ssub.s32 %s22, %s34
      %s156 = ssub.s32 %s23, %s30
      %s157 = sor.u32 %s155, %s156
      %p158 = scmp.eq.s32.totalorder %s157, 0
      %s160 = sadd.s32 %s159, 1
      %s161 = scalar_select %p158, %s159, %s160
      %p164 = pneg %p158
      %p165 = scmp.eq.s32.totalorder %s15, 1
      %p166 = por %p164, %p165
      %p167 = scmp.ne.s32.totalorder %s159, %s162
      %p168 = scmp.eq.s32.totalorder %s15, 0
      %p169 = por %p167, %p168
      %p170 = scmp.ne.s32.totalorder %s159, %s162
      %p171 = scmp.eq.s32.totalorder %s20, 1
      %p172 = por %p170, %p171
      %p173 = scmp.ne.s32.totalorder %s162, %s163
      %p174 = scmp.eq.s32.totalorder %s20, 0
      %p175 = por %p173, %p174
      %p176 = scmp.ne.s32.totalorder %s162, %s163
      %p177 = scmp.eq.s32.totalorder %s21, 1
      %p178 = por %p176, %p177
      %p180 = scmp.ne.s32.totalorder %s163, %s179
      %p181 = scmp.eq.s32.totalorder %s21, 0
      %p182 = por %p180, %p181
      %p183 = scmp.le.s32.totalorder 1, %s15
      %p184 = scmp.lt.s32.totalorder %s15, 3
      %p185 = pnand %p183, %p184
      %p186 = pneg %p185
      // Predicated region
      $region9: #{tpu_custom_call.1} parent=5 // pred_check
        _
      $region10: #{tpu_custom_call.1} parent=5 // pred_check_branch
        %188 = sbr.rel (%p185) target = $region12
      $region11: #{tpu_custom_call.1} parent=5 // pred_region
        %s189 = ssub.s32 %s15, 1
        // Predicated region
        $region13: #{tpu_custom_call.1} parent=11 // pred_check
          %p190 = pneg %p74
        $region14: #{tpu_custom_call.1} parent=11 // pred_check_branch
          %192 = sbr.rel (%p190) target = $region16
        $region15: #{tpu_custom_call.1} parent=11 // pred_region
          _
        $region16: #{tpu_custom_call.1} parent=11 // pred_fallthru
          _
        // Predicated region
        $region17: #{tpu_custom_call.1} parent=11 // pred_check
          %p193 = pneg %p95
        $region18: #{tpu_custom_call.1} parent=11 // pred_check_branch
          %195 = sbr.rel (%p193) target = $region20
        $region19: #{tpu_custom_call.1} parent=11 // pred_region
          _
        $region20: #{tpu_custom_call.1} parent=11 // pred_fallthru
          _
        // Predicated region
        $region21: #{tpu_custom_call.1} parent=11 // pred_check
          %p196 = pneg %p121
        $region22: #{tpu_custom_call.1} parent=11 // pred_check_branch
          %198 = sbr.rel (%p196) target = $region24
        $region23: #{tpu_custom_call.1} parent=11 // pred_region
          %s199 = smul.u32 2, %s25
          %s201 = ssub.s32 4096, 4096
          %202 = vsyncadd [#allocation4], %s201
          %s203 = smul.addr %s199, 64
          %s204 = scalar_lea.hbm %s3, %s203
          %s205 = sshll.u32 [#allocation3], 4
          %s206 = int_to_ptr.vmem [resolvable:$true] %s205
          %211 = dma.hbm_to_vmem [thread:$0]  %s204, 4096, %s206, [#allocation4], 128, 128, 8
        $region24: #{tpu_custom_call.1} parent=11 // pred_fallthru
          _
        // Predicated region
        $region25: #{tpu_custom_call.1} parent=11 // pred_check
          %p212 = pneg %p147
        $region26: #{tpu_custom_call.1} parent=11 // pred_check_branch
          %214 = sbr.rel (%p212) target = $region28
        $region27: #{tpu_custom_call.1} parent=11 // pred_region
          %s215 = smul.u32 2, %s25
          %p216 = scmp.lt.s32.totalorder %s215, 1
          %s217 = scalar_select %p216, %s215, 1
          %s218 = scalar_lea.vmem %s4, %s217
          %s219 = smul.u32 2, %s25
        $region28: #{tpu_custom_call.1} parent=11 // pred_fallthru
          _
      $region12: #{tpu_custom_call.1} parent=5 // pred_fallthru
        _
      %p220 = scmp.lt.s32.totalorder %s15, 2
      // Predicated region
      $region29: #{tpu_custom_call.1} parent=5 // pred_check
        %p221 = pneg %p220
      $region30: #{tpu_custom_call.1} parent=5 // pred_check_branch
        %223 = sbr.rel (%p221) target = $region32
      $region31: #{tpu_custom_call.1} parent=5 // pred_region
        // Predicated region
        $region33: #{tpu_custom_call.1} parent=31 // pred_check
          %p224 = pneg %p47
        $region34: #{tpu_custom_call.1} parent=31 // pred_check_branch
          %226 = sbr.rel (%p224) target = $region36
        $region35: #{tpu_custom_call.1} parent=31 // pred_region
          %s227 = smul.u32 2, %s22
          %p228 = scmp.lt.s32.totalorder %s227, 3
          %s229 = scalar_select %p228, %s227, 3
          %s230 = smul.addr %s229, 8
          %s231 = scalar_lea.vmem %s0, %s230
          %s232 = smul.u32 2, %s22
        $region36: #{tpu_custom_call.1} parent=31 // pred_fallthru
          _
      $region32: #{tpu_custom_call.1} parent=5 // pred_fallthru
        _
      %p233 = scmp.le.s32.totalorder 1, %s15
      %p234 = scmp.lt.s32.totalorder %s15, 3
      %p235 = pnand %p233, %p234
      %p236 = pneg %p235
      // Predicated region
      $region37: #{tpu_custom_call.1} parent=5 // pred_check
        _
      $region38: #{tpu_custom_call.1} parent=5 // pred_check_branch
        %238 = sbr.rel (%p235) target = $region40
      $region39: #{tpu_custom_call.1} parent=5 // pred_region
        %s239 = ssub.s32 %s15, 1
        // Predicated region
        $region41: #{tpu_custom_call.1} parent=39 // pred_check
          %p240 = pneg %p121
        $region42: #{tpu_custom_call.1} parent=39 // pred_check_branch
          %242 = sbr.rel (%p240) target = $region44
        $region43: #{tpu_custom_call.1} parent=39 // pred_region
          %243 = dma.done [#allocation4], 4096
        $region44: #{tpu_custom_call.1} parent=39 // pred_fallthru
          _
        %s244 = smul.u32 2, %s24
        %p245 = scmp.lt.s32.totalorder %s244, 3
        %s246 = scalar_select %p245, %s244, 3
        %s247 = smul.addr %s246, 8
        %s248 = scalar_lea.vmem %s0, %s247
        %p249 = pneg %p53
        %p250 = pneg %p50
        %p251 = pneg %p74
        %p252 = pneg %p71
        %p253 = pneg %p95
        %p254 = pneg %p92
        %p255 = pneg %p121
        %p256 = pneg %p118
        %s257 = smul.u32 2, %s25
        %p258 = scmp.lt.s32.totalorder %s257, 1
        %s259 = scalar_select %p258, %s257, 1
        %s260 = scalar_lea.vmem %s4, %s259
        %p261 = pneg %p147
        %p262 = pneg %p144
        %p263 = pneg %p175
        %p264 = pneg %p172
        %s265 = sand.u32 %s162, 1
        %s266 = scalar_lea.sflag [#allocation5], %s265
        %s267 = sand.u32 %s162, 1
        %s268 = smul.addr %s267, 32
        %s269 = scalar_lea.vmem [#allocation6], %s268
        %s270 = smul.u32 2, %s24
        %p271 = scmp.lt.s32.totalorder %s270, 3
        %s272 = scalar_select %p271, %s270, 3
        %s273 = smul.addr %s272, 8
        %s274 = scalar_lea.vmem %s0, %s273
        %s275 = smul.u32 2, %s24
        %s276 = smul.u32 2, %s25
        %s277 = smul.u32 2, %s25
        %p278 = scmp.lt.s32.totalorder %s277, 1
        %s279 = scalar_select %p278, %s277, 1
        %s280 = scalar_lea.vmem %s4, %s279
        %s281 = smul.u32 2, %s25
        %s282 = smul.u32 2, %s24
        %s283 = smul.u32 2, %s25
        %p285 = scmp.eq.s32.totalorder %s25, 0
        // Predicated region
        $region45: #{tpu_custom_call.1} parent=39 // pred_check
          %p286 = pneg %p285
        $region46: #{tpu_custom_call.1} parent=39 // pred_check_branch
          %288 = sbr.rel (%p286) target = $region48
        $region47: #{tpu_custom_call.1} parent=39 // pred_region
          %v289 = vld [vmem:[%s274] sm:$0xff]
          %v290 = vld [vmem:[%s274 + $0x8] sm:$0xff]
          %v291 = vpack.c.bf16 %v290, %v289
          %v292 = vld [vmem:[%s1] sm:$0xff]
          %v293 = vld [vmem:[%s1 + $0x8] sm:$0xff]
          %v294 = vld [vmem:[%s2] sm:$0x3]
          %v296 = vlaneseq
          %v297 = vshrl.u32 %v296, 7
          %v298 = vsub.s32 0, %v297
          %v299 = vrot.slane %v294, %v298
          %v300 = vlaneseq
          %v301 = vshrl.u32 %v300, 7
          %v302 = vsub.s32 1, %v301
          %v303 = vrot.slane %v294, %v302
          %v308 = vunpack.c.l.b16 %v292
          %v309 = vunpack.c.h.b16 %v292
          %v310 = vunpack.c.l.b16 %v293
          %v311 = vunpack.c.h.b16 %v293
          %v312 = vpack.c.b16 %v310, %v308
          %v313 = vpack.c.b16 %v311, %v309
          %vm316 = vcmask 130048
          %v318 = vsel %vm316, %v291, 0
          %320 = vmatprep.subr.bf16.mxu0 %v313
          %321 = vmatpush1.bf16.msra.mxu0 %v312
          %322 = vmatprep.subr.bf16.mxu0 0
          %323 = vmatpush1.bf16.msra.mxu0 0
          %324 = vmatprep.subr.bf16.mxu0 0
          %325 = vmatpush1.bf16.msra.mxu0 0
          %326 = vmatprep.subr.bf16.mxu0 0
          %327 = vmatpush1.bf16.msra.mxu0 0
          %328 = vmatprep.subr.bf16.mxu0 0
          %329 = vmatpush1.bf16.msra.mxu0 0
          %330 = vmatprep.subr.bf16.mxu0 0
          %331 = vmatpush1.bf16.msra.mxu0 0
          %332 = vmatprep.subr.bf16.mxu0 0
          %333 = vmatpush1.bf16.msra.mxu0 0
          %334 = vmatprep.subr.bf16.mxu0 0
          %335 = vmatpush1.bf16.msra.mxu0 0
          %336 = vmatprep.subr.bf16.mxu0 0
          %337 = vmatpush1.bf16.msra.mxu0 0
          %338 = vmatprep.subr.bf16.mxu0 0
          %339 = vmatpush1.bf16.msra.mxu0 0
          %340 = vmatprep.subr.bf16.mxu0 0
          %341 = vmatpush1.bf16.msra.mxu0 0
          %342 = vmatprep.subr.bf16.mxu0 0
          %343 = vmatpush1.bf16.msra.mxu0 0
          %344 = vmatprep.subr.bf16.mxu0 0
          %345 = vmatpush1.bf16.msra.mxu0 0
          %346 = vmatprep.subr.bf16.mxu0 0
          %347 = vmatpush1.bf16.msra.mxu0 0
          %348 = vmatprep.subr.bf16.mxu0 0
          %349 = vmatpush1.bf16.msra.mxu0 0
          %350 = vmatprep.subr.bf16.mxu0 0
          %351 = vmatpush1.bf16.msra.mxu0 0
          %352 = vmatprep.mubr.bf16.mxu0 0
          %353 = vmatmul.mubr.bf16.gmra.mrb[0].mxu0 %v318
          %v354 = vpop.f32.mrb[0].mxu0
          %v355 = vadd.f32 %v299, %v354
          %v356 = vpop.f32.mrb[0].mxu0
          %v357 = vadd.f32 %v303, %v356
          %v358 = vpop.f32.mrb[0].mxu0
          %v359 = vadd.f32 %v299, %v358
          %v360 = vpop.f32.mrb[0].mxu0
          %v361 = vadd.f32 %v303, %v360
          %362 = vdwg.mxu0
          %v363 = vmax.f32 %v355, 0.0
          %v364 = vmax.f32 %v357, 0.0
          %v365 = vmax.f32 %v359, 0.0
          %v366 = vmax.f32 %v361, 0.0
          %v367 = vpack.c.bf16 %v365, %v363
          %v368 = vpack.c.bf16 %v366, %v364
          %369 = vst [vmem:[#allocation2] sm:$0xff] %v367
          %370 = vst [vmem:[#allocation2 + $0x8] sm:$0xff] %v368
        $region48: #{tpu_custom_call.1} parent=39 // pred_fallthru
          _
        %v371 = vld [vmem:[#allocation2] sm:$0xff]
        %v372 = vld [vmem:[#allocation2 + $0x8] sm:$0xff]
        %v373 = vld [vmem:[#allocation3] sm:$0xff]
        %v374 = vld [vmem:[#allocation3 + $0x8] sm:$0xff]
        %v375 = vld [vmem:[#allocation3 + $0x10] sm:$0xff]
        %v376 = vld [vmem:[#allocation3 + $0x18] sm:$0xff]
        %v377 = vld [vmem:[#allocation3 + $0x20] sm:$0xff]
        %v378 = vld [vmem:[#allocation3 + $0x28] sm:$0xff]
        %v379 = vld [vmem:[#allocation3 + $0x30] sm:$0xff]
        %v380 = vld [vmem:[#allocation3 + $0x38] sm:$0xff]
        %v381 = vld [vmem:[#allocation3 + $0x40] sm:$0xff]
        %v382 = vld [vmem:[#allocation3 + $0x48] sm:$0xff]
        %v383 = vld [vmem:[#allocation3 + $0x50] sm:$0xff]
        %v384 = vld [vmem:[#allocation3 + $0x58] sm:$0xff]
        %v385 = vld [vmem:[#allocation3 + $0x60] sm:$0xff]
        %v386 = vld [vmem:[#allocation3 + $0x68] sm:$0xff]
        %v387 = vld [vmem:[#allocation3 + $0x70] sm:$0xff]
        %v388 = vld [vmem:[#allocation3 + $0x78] sm:$0xff]
        %v389 = vld [vmem:[#allocation3 + $0x80] sm:$0xff]
        %v390 = vld [vmem:[#allocation3 + $0x88] sm:$0xff]
        %v391 = vld [vmem:[#allocation3 + $0x90] sm:$0xff]
        %v392 = vld [vmem:[#allocation3 + $0x98] sm:$0xff]
        %v393 = vld [vmem:[#allocation3 + $0xa0] sm:$0xff]
        %v394 = vld [vmem:[#allocation3 + $0xa8] sm:$0xff]
        %v395 = vld [vmem:[#allocation3 + $0xb0] sm:$0xff]
        %v396 = vld [vmem:[#allocation3 + $0xb8] sm:$0xff]
        %v397 = vld [vmem:[#allocation3 + $0xc0] sm:$0xff]
        %v398 = vld [vmem:[#allocation3 + $0xc8] sm:$0xff]
        %v399 = vld [vmem:[#allocation3 + $0xd0] sm:$0xff]
        %v400 = vld [vmem:[#allocation3 + $0xd8] sm:$0xff]
        %v401 = vld [vmem:[#allocation3 + $0xe0] sm:$0xff]
        %v402 = vld [vmem:[#allocation3 + $0xe8] sm:$0xff]
        %v403 = vld [vmem:[#allocation3 + $0xf0] sm:$0xff]
        %v404 = vld [vmem:[#allocation3 + $0xf8] sm:$0xff]
        %v405 = vld [vmem:[%s280] sm:$0x3]
        %v407 = vlaneseq
        %v408 = vshrl.u32 %v407, 7
        %v409 = vsub.s32 0, %v408
        %v410 = vrot.slane %v405, %v409
        %v411 = vlaneseq
        %v412 = vshrl.u32 %v411, 7
        %v413 = vsub.s32 1, %v412
        %v414 = vrot.slane %v405, %v413
        %v449 = vunpack.c.l.b16 %v373
        %v450 = vunpack.c.h.b16 %v373
        %v451 = vunpack.c.l.b16 %v374
        %v452 = vunpack.c.h.b16 %v374
        %v453 = vunpack.c.l.b16 %v375
        %v454 = vunpack.c.h.b16 %v375
        %v455 = vunpack.c.l.b16 %v376
        %v456 = vunpack.c.h.b16 %v376
        %v457 = vunpack.c.l.b16 %v377
        %v458 = vunpack.c.h.b16 %v377
        %v459 = vunpack.c.l.b16 %v378
        %v460 = vunpack.c.h.b16 %v378
        %v461 = vunpack.c.l.b16 %v379
        %v462 = vunpack.c.h.b16 %v379
        %v463 = vunpack.c.l.b16 %v380
        %v464 = vunpack.c.h.b16 %v380
        %v465 = vunpack.c.l.b16 %v381
        %v466 = vunpack.c.h.b16 %v381
        %v467 = vunpack.c.l.b16 %v382
        %v468 = vunpack.c.h.b16 %v382
        %v469 = vunpack.c.l.b16 %v383
        %v470 = vunpack.c.h.b16 %v383
        %v471 = vunpack.c.l.b16 %v384
        %v472 = vunpack.c.h.b16 %v384
        %v473 = vunpack.c.l.b16 %v385
        %v474 = vunpack.c.h.b16 %v385
        %v475 = vunpack.c.l.b16 %v386
        %v476 = vunpack.c.h.b16 %v386
        %v477 = vunpack.c.l.b16 %v387
        %v478 = vunpack.c.h.b16 %v387
        %v479 = vunpack.c.l.b16 %v388
        %v480 = vunpack.c.h.b16 %v388
        %v481 = vunpack.c.l.b16 %v389
        %v482 = vunpack.c.h.b16 %v389
        %v483 = vunpack.c.l.b16 %v390
        %v484 = vunpack.c.h.b16 %v390
        %v485 = vunpack.c.l.b16 %v391
        %v486 = vunpack.c.h.b16 %v391
        %v487 = vunpack.c.l.b16 %v392
        %v488 = vunpack.c.h.b16 %v392
        %v489 = vunpack.c.l.b16 %v393
        %v490 = vunpack.c.h.b16 %v393
        %v491 = vunpack.c.l.b16 %v394
        %v492 = vunpack.c.h.b16 %v394
        %v493 = vunpack.c.l.b16 %v395
        %v494 = vunpack.c.h.b16 %v395
        %v495 = vunpack.c.l.b16 %v396
        %v496 = vunpack.c.h.b16 %v396
        %v497 = vunpack.c.l.b16 %v397
        %v498 = vunpack.c.h.b16 %v397
        %v499 = vunpack.c.l.b16 %v398
        %v500 = vunpack.c.h.b16 %v398
        %v501 = vunpack.c.l.b16 %v399
        %v502 = vunpack.c.h.b16 %v399
        %v503 = vunpack.c.l.b16 %v400
        %v504 = vunpack.c.h.b16 %v400
        %v505 = vunpack.c.l.b16 %v401
        %v506 = vunpack.c.h.b16 %v401
        %v507 = vunpack.c.l.b16 %v402
        %v508 = vunpack.c.h.b16 %v402
        %v509 = vunpack.c.l.b16 %v403
        %v510 = vunpack.c.h.b16 %v403
        %v511 = vunpack.c.l.b16 %v404
        %v512 = vunpack.c.h.b16 %v404
        %v513 = vpack.c.b16 %v451, %v449
        %v514 = vpack.c.b16 %v452, %v450
        %v515 = vpack.c.b16 %v455, %v453
        %v516 = vpack.c.b16 %v456, %v454
        %v517 = vpack.c.b16 %v459, %v457
        %v518 = vpack.c.b16 %v460, %v458
        %v519 = vpack.c.b16 %v463, %v461
        %v520 = vpack.c.b16 %v464, %v462
        %v521 = vpack.c.b16 %v467, %v465
        %v522 = vpack.c.b16 %v468, %v466
        %v523 = vpack.c.b16 %v471, %v469
        %v524 = vpack.c.b16 %v472, %v470
        %v525 = vpack.c.b16 %v475, %v473
        %v526 = vpack.c.b16 %v476, %v474
        %v527 = vpack.c.b16 %v479, %v477
        %v528 = vpack.c.b16 %v480, %v478
        %v529 = vpack.c.b16 %v483, %v481
        %v530 = vpack.c.b16 %v484, %v482
        %v531 = vpack.c.b16 %v487, %v485
        %v532 = vpack.c.b16 %v488, %v486
        %v533 = vpack.c.b16 %v491, %v489
        %v534 = vpack.c.b16 %v492, %v490
        %v535 = vpack.c.b16 %v495, %v493
        %v536 = vpack.c.b16 %v496, %v494
        %v537 = vpack.c.b16 %v499, %v497
        %v538 = vpack.c.b16 %v500, %v498
        %v539 = vpack.c.b16 %v503, %v501
        %v540 = vpack.c.b16 %v504, %v502
        %v541 = vpack.c.b16 %v507, %v505
        %v542 = vpack.c.b16 %v508, %v506
        %v543 = vpack.c.b16 %v511, %v509
        %v544 = vpack.c.b16 %v512, %v510
        %577 = vmatprep.subr.bf16.mxu0 %v514
        %578 = vmatpush1.bf16.msra.mxu0 %v513
        %579 = vmatprep.subr.bf16.mxu0 %v516
        %580 = vmatpush1.bf16.msra.mxu0 %v515
        %581 = vmatprep.subr.bf16.mxu0 %v518
        %582 = vmatpush1.bf16.msra.mxu0 %v517
        %583 = vmatprep.subr.bf16.mxu0 %v520
        %584 = vmatpush1.bf16.msra.mxu0 %v519
        %585 = vmatprep.subr.bf16.mxu0 %v522
        %586 = vmatpush1.bf16.msra.mxu0 %v521
        %587 = vmatprep.subr.bf16.mxu0 %v524
        %588 = vmatpush1.bf16.msra.mxu0 %v523
        %589 = vmatprep.subr.bf16.mxu0 %v526
        %590 = vmatpush1.bf16.msra.mxu0 %v525
        %591 = vmatprep.subr.bf16.mxu0 %v528
        %592 = vmatpush1.bf16.msra.mxu0 %v527
        %593 = vmatprep.subr.bf16.mxu0 %v530
        %594 = vmatpush1.bf16.msra.mxu0 %v529
        %595 = vmatprep.subr.bf16.mxu0 %v532
        %596 = vmatpush1.bf16.msra.mxu0 %v531
        %597 = vmatprep.subr.bf16.mxu0 %v534
        %598 = vmatpush1.bf16.msra.mxu0 %v533
        %599 = vmatprep.subr.bf16.mxu0 %v536
        %600 = vmatpush1.bf16.msra.mxu0 %v535
        %601 = vmatprep.subr.bf16.mxu0 %v538
        %602 = vmatpush1.bf16.msra.mxu0 %v537
        %603 = vmatprep.subr.bf16.mxu0 %v540
        %604 = vmatpush1.bf16.msra.mxu0 %v539
        %605 = vmatprep.subr.bf16.mxu0 %v542
        %606 = vmatpush1.bf16.msra.mxu0 %v541
        %607 = vmatprep.subr.bf16.mxu0 %v544
        %608 = vmatpush1.bf16.msra.mxu0 %v543
        %609 = vmatprep.mubr.bf16.mxu0 %v372
        %610 = vmatmul.mubr.bf16.gmra.mrb[0].mxu0 %v371
        %v611 = vpop.f32.mrb[0].mxu0
        %v612 = vadd.f32 %v410, %v611
        %v613 = vpop.f32.mrb[0].mxu0
        %v614 = vadd.f32 %v414, %v613
        %v615 = vpop.f32.mrb[0].mxu0
        %v616 = vadd.f32 %v410, %v615
        %v617 = vpop.f32.mrb[0].mxu0
        %v618 = vadd.f32 %v414, %v617
        %619 = vdwg.mxu0
        %620 = vst [vmem:[%s269] sm:$0xff] %v612
        %621 = vst [vmem:[%s269 + $0x8] sm:$0xff] %v614
        %622 = vst [vmem:[%s269 + $0x10] sm:$0xff] %v616
        %623 = vst [vmem:[%s269 + $0x18] sm:$0xff] %v618
        %s624 = sand.u32 %s162, 1
        %s625 = scalar_lea.sflag [#allocation5], %s624
        %s626 = sand.u32 %s162, 1
        %s627 = smul.addr %s626, 32
        %s628 = scalar_lea.vmem [#allocation6], %s627
        // Predicated region
        $region49: #{tpu_custom_call.1} parent=39 // pred_check
          %p629 = pneg %p172
        $region50: #{tpu_custom_call.1} parent=39 // pred_check_branch
          %631 = sbr.rel (%p629) target = $region52
        $region51: #{tpu_custom_call.1} parent=39 // pred_region
          %s632 = smul.u32 2, %s24
          %s633 = smul.u32 2, %s25
          %s635 = ssub.s32 512, 512
          %636 = vsyncadd %s625, %s635
          %s637 = smul.addr %s632, 2
          %s638 = sadd.s32 %s633, %s637
          %s639 = smul.addr %s638, 128
          %s640 = scalar_lea.hbm %s5, %s639
          %s641 = sshll.u32 %s628, 4
          %s642 = int_to_ptr.vmem [resolvable:$true] %s641
          %647 = dma.vmem_to_hbm [thread:$0]  %s642, 512, %s640, %s625, 256, 256, 16
        $region52: #{tpu_custom_call.1} parent=39 // pred_fallthru
          _
      $region40: #{tpu_custom_call.1} parent=5 // pred_fallthru
        _
      %p648 = scmp.le.s32.totalorder 2, %s15
      // Predicated region
      $region53: #{tpu_custom_call.1} parent=5 // pred_check
        %p649 = pneg %p648
      $region54: #{tpu_custom_call.1} parent=5 // pred_check_branch
        %651 = sbr.rel (%p649) target = $region56
      $region55: #{tpu_custom_call.1} parent=5 // pred_region
        %s652 = ssub.s32 %s15, 2
        // Predicated region
        $region57: #{tpu_custom_call.1} parent=55 // pred_check
          %p653 = pneg %p178
        $region58: #{tpu_custom_call.1} parent=55 // pred_check_branch
          %655 = sbr.rel (%p653) target = $region60
        $region59: #{tpu_custom_call.1} parent=55 // pred_region
          %s656 = sand.u32 %s163, 1
          %s657 = scalar_lea.sflag [#allocation5], %s656
          %s658 = sand.u32 %s163, 1
          %s659 = smul.addr %s658, 32
          %s660 = scalar_lea.vmem [#allocation6], %s659
          %661 = dma.done %s657, 512
        $region60: #{tpu_custom_call.1} parent=55 // pred_fallthru
          _
      $region56: #{tpu_custom_call.1} parent=5 // pred_fallthru
        _
    $region6: #{tpu_custom_call.1} parent=1 // loop_footer
      %s19 = sadd.s32 1, %s15
    $region7: #{tpu_custom_call.1} parent=1 // loop_footer_branch
      %14 = sbr.rel target = $region3
    $region8: #{tpu_custom_call.1} parent=1 // loop_exit
      _
    %662 = vsyncpa [#allocation4], 1
    %s663 = scalar_lea.sflag [#allocation4], 1
    %664 = vsyncpa %s663, 1
    %665 = vsyncpa [#allocation5], 1
    %s666 = scalar_lea.sflag [#allocation5], 1
    %667 = vsyncpa %s666, 1

</llo_original>
